<compile_context>
chip_gen: v6e
topology: v6e:2x2x1
jax: 0.10.0
libtpu: 0.0.40
codegen_flags: <defaults>
</compile_context>

<pallas_src>
import time
import numpy as np
import jax
import jax.numpy as jnp
from jax.experimental import pallas as pl
from jax.experimental.pallas import tpu as pltpu


def _round_up(x, mult):
    return ((x + mult - 1) // mult) * mult


def fista_iter_kernel(mom_ref, thr_ref,           # SMEM: momentum table, threshold
                      wyd_ref, sd_ref, dmat_ref,  # VMEM: wyD (b,k), SD (n,k), D (k,n)
                      out_ref,                    # VMEM out tile: (batch_p, n_p)
                      d_ref, d0_ref):             # VMEM scratch carried across grid
    it = pl.program_id(0)

    @pl.when(it == 0)
    def _init():
        d_ref[...] = jnp.zeros_like(d_ref)
        d0_ref[...] = jnp.zeros_like(d0_ref)

    mom = mom_ref[it]          # (alpha_0 - 1) / alpha_1, precomputed on host
    thr = thr_ref[0, 0]

    d = d_ref[...]
    d0 = d0_ref[...]
    # z = d + mom * (d - d0)  ==  (1 + mom) * d - mom * d0
    z = (1.0 + mom) * d - mom * d0

    # u = z @ (S.T D.T) + (y W.T D.T)            (batch_p, k_p)
    u = jnp.dot(z.astype(sd_ref.dtype), sd_ref[...],
                preferred_element_type=jnp.float32) + wyd_ref[...]
    # soft threshold
    s = jnp.maximum(u - thr, 0.0) - jnp.maximum(-u - thr, 0.0)
    # d_new = s @ D                              (batch_p, n_p)
    d_new = jnp.dot(s.astype(dmat_ref.dtype), dmat_ref[...],
                    preferred_element_type=jnp.float32)

    out_ref[...] = d_new       # single lane-dense store per iteration
    d0_ref[...] = d
    d_ref[...] = d_new


def rtf_fista_forward(y, S, W, D, thr, num_iter, weight_dtype=jnp.float32):
    """Pallas implementation of a_RTF_FISTA_model.forward.

    Returns (x_stack, time_list); x_stack has shape (num_iter+1, batch, n) with
    x_stack[0] == 0 and x_stack[i] the i-th FISTA iterate.
    """
    assert num_iter >= 1
    y = np.asarray(jax.device_get(y), np.float32)
    S = np.asarray(jax.device_get(S), np.float32)
    W = np.asarray(jax.device_get(W), np.float32)
    D = np.asarray(jax.device_get(D), np.float32)

    batch, _ = y.shape
    n = S.shape[0]
    k = D.shape[0]

    batch_p = max(8, _round_up(batch, 8))
    n_p = _round_up(n, 128)
    k_p = _round_up(k, 128)

    # Loop-invariant precomputes (done once, host side — same role as weights_init).
    SD = (S.T @ D.T).astype(np.float32)            # (n, k)
    wyD = ((y @ W.T) @ D.T).astype(np.float32)     # (batch, k)

    SD_p = np.zeros((n_p, k_p), np.float32); SD_p[:n, :k] = SD
    D_p = np.zeros((k_p, n_p), np.float32);  D_p[:k, :n] = D
    wyD_p = np.zeros((batch_p, k_p), np.float32); wyD_p[:batch, :k] = wyD

    # Momentum coefficients exactly as the torch loop computes them.
    mom = np.empty((num_iter,), np.float32)
    a1 = 1.0
    for i in range(num_iter):
        a0 = a1
        a1 = 0.5 + np.sqrt(1.0 + 4.0 * a0 ** 2) / 2.0
        mom[i] = (a0 - 1.0) / a1
    thr_arr = np.full((1, 1), np.float32(thr), np.float32)

    # VMEM budget: weights + carried state + double-buffered output tile (+ margin).
    resident_bytes = 4 * (SD_p.size + D_p.size + wyD_p.size
                          + 2 * batch_p * n_p        # d, d0 scratch
                          + 2 * batch_p * n_p)       # double-buffered out tile
    vmem_limit = int(min(64 * 2**20, max(8 * 2**20, 2 * resident_bytes + 2 * 2**20)))

    start = time.time()
    out = pl.pallas_call(
        fista_iter_kernel,
        out_shape=jax.ShapeDtypeStruct((num_iter, batch_p, n_p), jnp.float32),
        grid=(num_iter,),
        in_specs=[
            pl.BlockSpec(memory_space=pltpu.MemorySpace.SMEM),            # mom
            pl.BlockSpec(memory_space=pltpu.MemorySpace.SMEM),            # thr
            pl.BlockSpec((batch_p, k_p), lambda it: (0, 0)),              # wyD
            pl.BlockSpec((n_p, k_p), lambda it: (0, 0)),                  # SD
            pl.BlockSpec((k_p, n_p), lambda it: (0, 0)),                  # D
        ],
        out_specs=pl.BlockSpec((None, batch_p, n_p), lambda it: (it, 0, 0)),
        scratch_shapes=[pltpu.VMEM((batch_p, n_p), jnp.float32),          # d
                        pltpu.VMEM((batch_p, n_p), jnp.float32)],         # d_0
        compiler_params=pltpu.CompilerParams(
            dimension_semantics=("arbitrary",),   # iterations are sequential
            vmem_limit_bytes=vmem_limit),
    )(jnp.asarray(mom), jnp.asarray(thr_arr),
      jnp.asarray(wyD_p),
      jnp.asarray(SD_p).astype(weight_dtype),
      jnp.asarray(D_p).astype(weight_dtype))
    out = jax.block_until_ready(out)

    x_stack = jnp.concatenate(
        [jnp.zeros((1, batch, n), jnp.float32), out[:, :batch, :n]], axis=0)
    x_stack = jax.block_until_ready(x_stack)
    # TODO(synk): per-iteration host wall-clock (torch's time_list) has no in-kernel
    # equivalent; one host timing around the whole call is returned for each iter.
    time_list = [time.time() - start] * num_iter
    return x_stack, time_list


def _weights_init(A, D2, t):
    """Replicates a_RTF_FISTA_model.weights_init in numpy (parameter setup glue)."""
    Ainv = np.linalg.pinv(A)
    AinvA = Ainv @ A
    d_AinvA = np.linalg.inv(np.diag(np.diag(AinvA)))
    Ainv = d_AinvA @ Ainv
    alpha = np.linalg.norm(Ainv @ A, 2) * 1.001
    S = np.eye(A.shape[1]) - (1.0 / alpha) * (Ainv @ A)
    B = (1.0 / alpha) * Ainv
    thr = np.ones((1, 1)) * t / alpha
    return (S.astype(np.float32), B.astype(np.float32),
            D2.astype(np.float32), thr.astype(np.float32))


def _reference_forward(y, S, W, D, thr, num_iter):
    """Pure numpy/f32 reference mirroring the torch forward."""
    y = np.asarray(y, np.float32)
    batch = y.shape[0]
    n = S.shape[0]
    d = np.zeros((batch, n), np.float32)
    d0 = np.zeros((batch, n), np.float32)
    xs = [d]
    a1 = 1.0
    for _ in range(num_iter):
        a0 = a1
        a1 = 0.5 + np.sqrt(1.0 + 4.0 * a0 ** 2) / 2.0
        z = d + np.float32((a0 - 1.0) / a1) * (d - d0)
        d0 = d
        pre = (S @ z.T).T + (W @ y.T).T          # (batch, n)
        u = (D @ pre.T)                          # (k, batch)
        s = np.maximum(u - thr, 0.0) - np.maximum(-u - thr, 0.0)
        d = (D.T @ s).T                          # (batch, n)
        xs.append(d.astype(np.float32))
    return np.stack(xs, axis=0)


if __name__ == "__main__":
    # Small problem sizes implied by the module: y in R^{batch x m}, codes in R^n,
    # dictionary D in R^{k x n}.
    batch, m, n, k = 2, 16, 32, 48
    num_iter = 6
    t_thr = 0.1

    key = jax.random.PRNGKey(0)
    k_a, k_d, k_y = jax.random.split(key, 3)
    A_np = np.asarray(jax.random.normal(k_a, (m, n), jnp.float32)) / np.sqrt(m)
    D2_np = np.asarray(jax.random.normal(k_d, (k, n), jnp.float32)) / np.sqrt(k)
    y = jax.random.normal(k_y, (batch, m), jnp.float32)

    S_np, W_np, D_np, thr_np = _weights_init(A_np.astype(np.float64),
                                             D2_np.astype(np.float64), t_thr)

    x_stack, time_list = rtf_fista_forward(
        y, jnp.asarray(S_np), jnp.asarray(W_np), jnp.asarray(D_np),
        thr_np[0, 0], num_iter)

    ref = _reference_forward(np.asarray(y), S_np, W_np, D_np, thr_np[0, 0], num_iter)
    np.testing.assert_allclose(np.asarray(x_stack), ref, rtol=1e-2, atol=1e-2)

    print("KERNEL_OK")
</pallas_src>

<mosaic_0001>
module attributes {stable_mosaic.version = 11 : i64} {
  func.func @fista_iter_kernel(%arg0: i32, %arg1: memref<6xf32, #tpu.memory_space<smem>>, %arg2: memref<1x1xf32, #tpu.memory_space<smem>>, %arg3: memref<8x128xf32, #tpu.memory_space<vmem>>, %arg4: memref<128x128xf32, #tpu.memory_space<vmem>>, %arg5: memref<128x128xf32, #tpu.memory_space<vmem>>, %arg6: memref<1x8x128xf32, #tpu.memory_space<vmem>>, %arg7: memref<8x128xf32, #tpu.memory_space<vmem>>, %arg8: memref<8x128xf32, #tpu.memory_space<vmem>>) attributes {dimension_semantics = [#tpu.dimension_semantics<arbitrary>], iteration_bounds = array<i64: 6>, scalar_prefetch = 0 : i64, scratch_operands = 2 : i64, tpu.core_type = #tpu.core_type<tc>, window_params = [{transform_indices = @transform_0, window_bounds = array<i64: 6>}, {transform_indices = @transform_1, window_bounds = array<i64: 1, 1>}, {pipeline_mode = #tpu.pipeline_mode<synchronous>, transform_indices = @transform_2, window_bounds = array<i64: 8, 128>}, {pipeline_mode = #tpu.pipeline_mode<synchronous>, transform_indices = @transform_3, window_bounds = array<i64: 128, 128>}, {pipeline_mode = #tpu.pipeline_mode<synchronous>, transform_indices = @transform_4, window_bounds = array<i64: 128, 128>}, {transform_indices = @transform_5, window_bounds = array<i64: 1, 8, 128>}]} {
    %c0_i32 = arith.constant 0 : i32
    %0 = arith.cmpi eq, %arg0, %c0_i32 : i32
    %1 = arith.extui %0 : i1 to i32
    %c0_i32_0 = arith.constant 0 : i32
    %2 = arith.cmpi ne, %1, %c0_i32_0 : i32
    scf.if %2 {
      %cst_24 = arith.constant 0.000000e+00 : f32
      %36 = vector.broadcast %cst_24 : f32 to vector<8x128xf32>
      %c0_25 = arith.constant 0 : index
      %c0_26 = arith.constant 0 : index
      %37 = vector.load %arg7[%c0_25, %c0_26] : memref<8x128xf32, #tpu.memory_space<vmem>>, vector<8x128xf32>
      tpu.vector_store %arg7[%c0_25, %c0_26], %36 {strides = array<i32>} : memref<8x128xf32, #tpu.memory_space<vmem>>, vector<8x128xf32>,
      %cst_27 = arith.constant 0.000000e+00 : f32
      %38 = vector.broadcast %cst_27 : f32 to vector<8x128xf32>
      %c0_28 = arith.constant 0 : index
      %c0_29 = arith.constant 0 : index
      %39 = vector.load %arg8[%c0_28, %c0_29] : memref<8x128xf32, #tpu.memory_space<vmem>>, vector<8x128xf32>
      tpu.vector_store %arg8[%c0_28, %c0_29], %38 {strides = array<i32>} : memref<8x128xf32, #tpu.memory_space<vmem>>, vector<8x128xf32>,
    } else {
    }
    %3 = arith.index_cast %arg0 : i32 to index
    %4 = memref.load %arg1[%3] : memref<6xf32, #tpu.memory_space<smem>>
    %c0 = arith.constant 0 : index
    %c0_1 = arith.constant 0 : index
    %5 = memref.load %arg2[%c0, %c0_1] : memref<1x1xf32, #tpu.memory_space<smem>>
    %c0_2 = arith.constant 0 : index
    %c0_3 = arith.constant 0 : index
    %6 = vector.load %arg7[%c0_2, %c0_3] : memref<8x128xf32, #tpu.memory_space<vmem>>, vector<8x128xf32>
    %c0_4 = arith.constant 0 : index
    %c0_5 = arith.constant 0 : index
    %7 = vector.load %arg8[%c0_4, %c0_5] : memref<8x128xf32, #tpu.memory_space<vmem>>, vector<8x128xf32>
    %cst = arith.constant 1.000000e+00 : f32
    %8 = arith.addf %cst, %4 : f32
    %9 = vector.broadcast %8 : f32 to vector<8x128xf32>
    %10 = arith.mulf %9, %6 : vector<8x128xf32>
    %11 = vector.broadcast %4 : f32 to vector<8x128xf32>
    %12 = arith.mulf %11, %7 : vector<8x128xf32>
    %13 = arith.subf %10, %12 : vector<8x128xf32>
    %c0_6 = arith.constant 0 : index
    %c0_7 = arith.constant 0 : index
    %14 = vector.load %arg4[%c0_6, %c0_7] : memref<128x128xf32, #tpu.memory_space<vmem>>, vector<128x128xf32>
    %cst_8 = arith.constant dense<0.000000e+00> : vector<8x128xf32>
    %15 = tpu.matmul %13, %14, %cst_8 {dimension_numbers = #tpu.dot_dimension_numbers<[1], [0], [0], [1], [0, 0, 1, 1], [], []>} : vector<8x128xf32>, vector<128x128xf32>, vector<8x128xf32> -> vector<8x128xf32>
    %c0_9 = arith.constant 0 : index
    %c0_10 = arith.constant 0 : index
    %16 = vector.load %arg3[%c0_9, %c0_10] : memref<8x128xf32, #tpu.memory_space<vmem>>, vector<8x128xf32>
    %17 = arith.addf %15, %16 : vector<8x128xf32>
    %18 = vector.broadcast %5 : f32 to vector<8x128xf32>
    %19 = arith.subf %17, %18 : vector<8x128xf32>
    %cst_11 = arith.constant 0.000000e+00 : f32
    %20 = vector.broadcast %cst_11 : f32 to vector<8x128xf32>
    %21 = arith.maximumf %19, %20 : vector<8x128xf32>
    %cst_12 = arith.constant 0.000000e+00 : f32
    %22 = vector.broadcast %cst_12 : f32 to vector<8x128xf32>
    %23 = arith.subf %22, %17 : vector<8x128xf32>
    %24 = vector.broadcast %5 : f32 to vector<8x128xf32>
    %25 = arith.subf %23, %24 : vector<8x128xf32>
    %cst_13 = arith.constant 0.000000e+00 : f32
    %26 = vector.broadcast %cst_13 : f32 to vector<8x128xf32>
    %27 = arith.maximumf %25, %26 : vector<8x128xf32>
    %28 = arith.subf %21, %27 : vector<8x128xf32>
    %c0_14 = arith.constant 0 : index
    %c0_15 = arith.constant 0 : index
    %29 = vector.load %arg5[%c0_14, %c0_15] : memref<128x128xf32, #tpu.memory_space<vmem>>, vector<128x128xf32>
    %cst_16 = arith.constant dense<0.000000e+00> : vector<8x128xf32>
    %30 = tpu.matmul %28, %29, %cst_16 {dimension_numbers = #tpu.dot_dimension_numbers<[1], [0], [0], [1], [0, 0, 1, 1], [], []>} : vector<8x128xf32>, vector<128x128xf32>, vector<8x128xf32> -> vector<8x128xf32>
    %c0_17 = arith.constant 0 : index
    %c0_18 = arith.constant 0 : index
    %c0_19 = arith.constant 0 : index
    %31 = vector.load %arg6[%c0_17, %c0_18, %c0_19] : memref<1x8x128xf32, #tpu.memory_space<vmem>>, vector<1x8x128xf32>
    %32 = vector.shape_cast %31 : vector<1x8x128xf32> to vector<8x128xf32>
    %33 = vector.shape_cast %30 : vector<8x128xf32> to vector<1x8x128xf32>
    tpu.vector_store %arg6[%c0_17, %c0_18, %c0_19], %33 {strides = array<i32>} : memref<1x8x128xf32, #tpu.memory_space<vmem>>, vector<1x8x128xf32>,
    %c0_20 = arith.constant 0 : index
    %c0_21 = arith.constant 0 : index
    %34 = vector.load %arg8[%c0_20, %c0_21] : memref<8x128xf32, #tpu.memory_space<vmem>>, vector<8x128xf32>
    tpu.vector_store %arg8[%c0_20, %c0_21], %6 {strides = array<i32>} : memref<8x128xf32, #tpu.memory_space<vmem>>, vector<8x128xf32>,
    %c0_22 = arith.constant 0 : index
    %c0_23 = arith.constant 0 : index
    %35 = vector.load %arg7[%c0_22, %c0_23] : memref<8x128xf32, #tpu.memory_space<vmem>>, vector<8x128xf32>
    tpu.vector_store %arg7[%c0_22, %c0_23], %30 {strides = array<i32>} : memref<8x128xf32, #tpu.memory_space<vmem>>, vector<8x128xf32>,
    return
  }
  func.func @transform_0(%arg0: i32) -> i32 {
    %c0_i32 = arith.constant 0 : i32
    %c0_i32_0 = arith.constant 0 : i32
    return %c0_i32 : i32
  }
  func.func @transform_1(%arg0: i32) -> (i32, i32) {
    %c0_i32 = arith.constant 0 : i32
    %c0_i32_0 = arith.constant 0 : i32
    %c0_i32_1 = arith.constant 0 : i32
    return %c0_i32, %c0_i32_0 : i32, i32
  }
  func.func @transform_2(%arg0: i32) -> (i32, i32) {
    %c0_i32 = arith.constant 0 : i32
    %c0_i32_0 = arith.constant 0 : i32
    %c0_i32_1 = arith.constant 0 : i32
    return %c0_i32, %c0_i32_0 : i32, i32
  }
  func.func @transform_3(%arg0: i32) -> (i32, i32) {
    %c0_i32 = arith.constant 0 : i32
    %c0_i32_0 = arith.constant 0 : i32
    %c0_i32_1 = arith.constant 0 : i32
    return %c0_i32, %c0_i32_0 : i32, i32
  }
  func.func @transform_4(%arg0: i32) -> (i32, i32) {
    %c0_i32 = arith.constant 0 : i32
    %c0_i32_0 = arith.constant 0 : i32
    %c0_i32_1 = arith.constant 0 : i32
    return %c0_i32, %c0_i32_0 : i32, i32
  }
  func.func @transform_5(%arg0: i32) -> (i32, i32, i32) {
    %c0_i32 = arith.constant 0 : i32
    %c0_i32_0 = arith.constant 0 : i32
    %c0_i32_1 = arith.constant 0 : i32
    return %arg0, %c0_i32, %c0_i32_0 : i32, i32, i32
  }
}

</mosaic_0001>

<llo_original>
// kernel: tpu_custom_call.1
$region0: #{tpu_custom_call.1}
  #allocation0 [shape = 'u32[]', space=smem, size = 0x4, offset = 0x4, fixed_abs, tag = 'smem constant byte address 0x4 - core index']
  #allocation1 [shape = 'u32[144,128]{1,0:T(1,128)}', space=vmem, size = 0x12000, scoped, tag = 'internal scratch']
  #allocation2 [shape = 'f32[8,128]{1,0:T(8,128)}', space=vmem, size = 0x1000, scoped, tag = 'scratch operand']
  #allocation3 [shape = 'f32[8,128]{1,0:T(8,128)}', space=vmem, size = 0x1000, scoped, tag = 'scratch operand']
  #allocation4 [shape = 'f32[1,1]{1,0:T(1,128)S(6)}', space=smem, size = 0x200, scoped, tag = 'scoped memory for tpu_custom_call.1']
  %s0 = inlined_call_operand.vmem [shape: f32[6], index: 0, kind: input, shape index: {}]
  %s1 = inlined_call_operand.<no memory space> [shape: f32[1,1], index: 1, kind: input, shape index: {}]
  %s2 = inlined_call_operand.hbm [shape: f32[8,128], index: 2, kind: input, shape index: {}]
  %s3 = inlined_call_operand.hbm [shape: f32[128,128], index: 3, kind: input, shape index: {}]
  %s4 = inlined_call_operand.hbm [shape: f32[128,128], index: 4, kind: input, shape index: {}]
  %s5 = inlined_call_operand.hbm [shape: f32[6,8,128], index: 5, kind: output, shape index: {}]
  %s6 = sld [smem:[#allocation0]]
  $region73: #{tpu_custom_call.1} parent=0
    _
  %s8 = ssub.s32 1, %s6
  %s9 = scalar_select 0, %s8, %s6
  %10 = sst [smem:[#allocation4]] %s1
  $region1: #{tpu_custom_call.1} parent=0
    #allocation5 [shape = 'u8[512]{0}', space=smem, size = 0x200, scoped, tag = 'input window, operand 0, single buffered']
    #allocation6 [shape = 's32[2]{0}', space=sflag, size = 0x8, scoped, tag = 'scoped memory for tpu_custom_call.1']
    #allocation7 [shape = 's32[2]{0}', space=sflag, size = 0x8, scoped, tag = 'scoped memory for tpu_custom_call.1']
    #allocation8 [shape = 's32[2]{0}', space=sflag, size = 0x8, scoped, tag = 'scoped memory for tpu_custom_call.1']
    #allocation9 [shape = 'u8[4096]{0}', space=vmem, size = 0x1000, scoped, tag = 'input window, operand 2, single buffered']
    #allocation10 [shape = 'u8[65536]{0}', space=vmem, size = 0x10000, scoped, tag = 'input window, operand 3, single buffered']
    #allocation11 [shape = 's32[1]{0}', space=sflag, size = 0x4, scoped, tag = 'scoped memory for tpu_custom_call.1']
    #allocation12 [shape = 'u8[65536]{0}', space=vmem, size = 0x10000, scoped, tag = 'input window, operand 4, single buffered']
    #allocation13 [shape = 'u8[8192]{0}', space=vmem, size = 0x2000, scoped, tag = 'output window, operand 0']
    %11 = vsyncpa [#allocation8], 0
    %12 = vsyncpa [#allocation6], 0
    %13 = vsyncpa [#allocation11], 0
    %14 = vsyncpa [#allocation7], 0
    %s15 = scalar_lea.sflag [#allocation7], 1
    %16 = vsyncpa %s15, 0
    loop: start=0, step=1, limit=8
    $region2: #{tpu_custom_call.1} parent=1 // loop_pre_header
      _
    $region3: #{tpu_custom_call.1} parent=1 // loop_header
      %s18 = sphi 0, %s22
      %p19 = scmp.ge.s32.totalorder %s18, 8
      %s26 = sphi 0, %s26
      %s28 = sphi 0, %s26
      %s29 = sphi 0, %s28
      %s43 = sphi 0, %s29
      %s47 = sphi 0, %s47
      %s49 = sphi 0, %s47
      %s50 = sphi 0, %s49
      %s64 = sphi 0, %s50
      %s68 = sphi 0, %s68
      %s70 = sphi 0, %s68
      %s71 = sphi 0, %s70
      %s85 = sphi 0, %s71
      %s89 = sphi 0, %s89
      %s91 = sphi 0, %s89
      %s92 = sphi 0, %s91
      %s106 = sphi 0, %s92
      %s110 = sphi 0, %s110
      %s112 = sphi 0, %s110
      %s113 = sphi 0, %s112
      %s127 = sphi 0, %s113
      %s133 = sphi 0, %s135
      %s136 = sphi 0, %s133
      %s137 = sphi 0, %s136
      %s153 = sphi 0, %s137
    $region4: #{tpu_custom_call.1} parent=1 // loop_header_branch
      %21 = sbr.rel (%p19) target = $region8
    $region5: #{tpu_custom_call.1} parent=1 // loop_body
      %s23 = ssub.s32 %s18, 1
      %s24 = ssub.s32 %s18, 2
      %s25 = sadd.s32 %s18, 1
      %s27 = sadd.s32 %s26, 1
      %p30 = scmp.eq.s32.totalorder %s18, 5
      %p31 = scmp.ne.s32.totalorder %s26, %s28
      %p32 = scmp.eq.s32.totalorder %s18, 0
      %p33 = por %p31, %p32
      %p34 = scmp.ne.s32.totalorder %s26, %s28
      %p35 = scmp.eq.s32.totalorder %s23, 5
      %p36 = por %p34, %p35
      %p37 = scmp.ne.s32.totalorder %s28, %s29
      %p38 = scmp.eq.s32.totalorder %s23, 0
      %p39 = por %p37, %p38
      %p40 = scmp.ne.s32.totalorder %s28, %s29
      %p41 = scmp.eq.s32.totalorder %s24, 5
      %p42 = por %p40, %p41
      %p44 = scmp.ne.s32.totalorder %s29, %s43
      %p45 = scmp.eq.s32.totalorder %s24, 0
      %p46 = por %p44, %p45
      %s48 = sadd.s32 %s47, 1
      %p51 = scmp.eq.s32.totalorder %s18, 5
      %p52 = scmp.ne.s32.totalorder %s47, %s49
      %p53 = scmp.eq.s32.totalorder %s18, 0
      %p54 = por %p52, %p53
      %p55 = scmp.ne.s32.totalorder %s47, %s49
      %p56 = scmp.eq.s32.totalorder %s23, 5
      %p57 = por %p55, %p56
      %p58 = scmp.ne.s32.totalorder %s49, %s50
      %p59 = scmp.eq.s32.totalorder %s23, 0
      %p60 = por %p58, %p59
      %p61 = scmp.ne.s32.totalorder %s49, %s50
      %p62 = scmp.eq.s32.totalorder %s24, 5
      %p63 = por %p61, %p62
      %p65 = scmp.ne.s32.totalorder %s50, %s64
      %p66 = scmp.eq.s32.totalorder %s24, 0
      %p67 = por %p65, %p66
      %s69 = sadd.s32 %s68, 1
      %p72 = scmp.eq.s32.totalorder %s18, 5
      %p73 = scmp.ne.s32.totalorder %s68, %s70
      %p74 = scmp.eq.s32.totalorder %s18, 0
      %p75 = por %p73, %p74
      %p76 = scmp.ne.s32.totalorder %s68, %s70
      %p77 = scmp.eq.s32.totalorder %s23, 5
      %p78 = por %p76, %p77
      %p79 = scmp.ne.s32.totalorder %s70, %s71
      %p80 = scmp.eq.s32.totalorder %s23, 0
      %p81 = por %p79, %p80
      %p82 = scmp.ne.s32.totalorder %s70, %s71
      %p83 = scmp.eq.s32.totalorder %s24, 5
      %p84 = por %p82, %p83
      %p86 = scmp.ne.s32.totalorder %s71, %s85
      %p87 = scmp.eq.s32.totalorder %s24, 0
      %p88 = por %p86, %p87
      %s90 = sadd.s32 %s89, 1
      %p93 = scmp.eq.s32.totalorder %s18, 5
      %p94 = scmp.ne.s32.totalorder %s89, %s91
      %p95 = scmp.eq.s32.totalorder %s18, 0
      %p96 = por %p94, %p95
      %p97 = scmp.ne.s32.totalorder %s89, %s91
      %p98 = scmp.eq.s32.totalorder %s23, 5
      %p99 = por %p97, %p98
      %p100 = scmp.ne.s32.totalorder %s91, %s92
      %p101 = scmp.eq.s32.totalorder %s23, 0
      %p102 = por %p100, %p101
      %p103 = scmp.ne.s32.totalorder %s91, %s92
      %p104 = scmp.eq.s32.totalorder %s24, 5
      %p105 = por %p103, %p104
      %p107 = scmp.ne.s32.totalorder %s92, %s106
      %p108 = scmp.eq.s32.totalorder %s24, 0
      %p109 = por %p107, %p108
      %s111 = sadd.s32 %s110, 1
      %p114 = scmp.eq.s32.totalorder %s18, 5
      %p115 = scmp.ne.s32.totalorder %s110, %s112
      %p116 = scmp.eq.s32.totalorder %s18, 0
      %p117 = por %p115, %p116
      %p118 = scmp.ne.s32.totalorder %s110, %s112
      %p119 = scmp.eq.s32.totalorder %s23, 5
      %p120 = por %p118, %p119
      %p121 = scmp.ne.s32.totalorder %s112, %s113
      %p122 = scmp.eq.s32.totalorder %s23, 0
      %p123 = por %p121, %p122
      %p124 = scmp.ne.s32.totalorder %s112, %s113
      %p125 = scmp.eq.s32.totalorder %s24, 5
      %p126 = por %p124, %p125
      %p128 = scmp.ne.s32.totalorder %s113, %s127
      %p129 = scmp.eq.s32.totalorder %s24, 0
      %p130 = por %p128, %p129
      %s131 = ssub.s32 %s18, %s25
      %p132 = scmp.eq.s32.totalorder %s131, 0
      %s134 = sadd.s32 %s133, 1
      %s135 = scalar_select %p132, %s133, %s134
      %p138 = pneg %p132
      %p139 = scmp.eq.s32.totalorder %s18, 5
      %p140 = por %p138, %p139
      %p141 = scmp.ne.s32.totalorder %s133, %s136
      %p142 = scmp.eq.s32.totalorder %s18, 0
      %p143 = por %p141, %p142
      %p144 = scmp.ne.s32.totalorder %s133, %s136
      %p145 = scmp.eq.s32.totalorder %s23, 5
      %p146 = por %p144, %p145
      %p147 = scmp.ne.s32.totalorder %s136, %s137
      %p148 = scmp.eq.s32.totalorder %s23, 0
      %p149 = por %p147, %p148
      %p150 = scmp.ne.s32.totalorder %s136, %s137
      %p151 = scmp.eq.s32.totalorder %s24, 5
      %p152 = por %p150, %p151
      %p154 = scmp.ne.s32.totalorder %s137, %s153
      %p155 = scmp.eq.s32.totalorder %s24, 0
      %p156 = por %p154, %p155
      %p157 = scmp.le.s32.totalorder 1, %s18
      %p158 = scmp.lt.s32.totalorder %s18, 7
      %p159 = pnand %p157, %p158
      %p160 = pneg %p159
      // Predicated region
      $region9: #{tpu_custom_call.1} parent=5 // pred_check
        _
      $region10: #{tpu_custom_call.1} parent=5 // pred_check_branch
        %162 = sbr.rel (%p159) target = $region12
      $region11: #{tpu_custom_call.1} parent=5 // pred_region
        %s163 = ssub.s32 %s18, 1
        // Predicated region
        $region13: #{tpu_custom_call.1} parent=11 // pred_check
          %p164 = pneg %p39
        $region14: #{tpu_custom_call.1} parent=11 // pred_check_branch
          %166 = sbr.rel (%p164) target = $region16
        $region15: #{tpu_custom_call.1} parent=11 // pred_region
          %s168 = ssub.s32 16, 16
          %169 = vsyncadd [#allocation8], %s168
          %s171 = sshll.u32 %s0, 4
          %s172 = int_to_ptr.vmem [resolvable:$true] %s171
          %174 = dma.vmem_to_smem %s172, 16, [#allocation5], [#allocation8]
        $region16: #{tpu_custom_call.1} parent=11 // pred_fallthru
          _
        // Predicated region
        $region17: #{tpu_custom_call.1} parent=11 // pred_check
          %p175 = pneg %p60
        $region18: #{tpu_custom_call.1} parent=11 // pred_check_branch
          %177 = sbr.rel (%p175) target = $region20
        $region19: #{tpu_custom_call.1} parent=11 // pred_region
          _
        $region20: #{tpu_custom_call.1} parent=11 // pred_fallthru
          _
        // Predicated region
        $region21: #{tpu_custom_call.1} parent=11 // pred_check
          %p178 = pneg %p81
        $region22: #{tpu_custom_call.1} parent=11 // pred_check_branch
          %180 = sbr.rel (%p178) target = $region24
        $region23: #{tpu_custom_call.1} parent=11 // pred_region
          %s182 = ssub.s32 128, 128
          %183 = vsyncadd [#allocation6], %s182
          %s185 = sshll.u32 [#allocation9], 4
          %s186 = int_to_ptr.vmem [resolvable:$true] %s185
          %188 = dma.hbm_to_vmem [thread:$0]  %s2, 128, %s186, [#allocation6]
        $region24: #{tpu_custom_call.1} parent=11 // pred_fallthru
          _
        // Predicated region
        $region25: #{tpu_custom_call.1} parent=11 // pred_check
          %p189 = pneg %p102
        $region26: #{tpu_custom_call.1} parent=11 // pred_check_branch
          %191 = sbr.rel (%p189) target = $region28
        $region27: #{tpu_custom_call.1} parent=11 // pred_region
          %s193 = ssub.s32 2048, 2048
          %194 = vsyncadd [#allocation11], %s193
          %s195 = sshll.u32 [#allocation10], 4
          %s196 = int_to_ptr.vmem [resolvable:$true] %s195
          %201 = dma.hbm_to_vmem [thread:$0]  %s3, 2048, %s196, [#allocation11], 128, 128, 8
        $region28: #{tpu_custom_call.1} parent=11 // pred_fallthru
          _
        // Predicated region
        $region29: #{tpu_custom_call.1} parent=11 // pred_check
          %p202 = pneg %p123
        $region30: #{tpu_custom_call.1} parent=11 // pred_check_branch
          %204 = sbr.rel (%p202) target = $region32
        $region31: #{tpu_custom_call.1} parent=11 // pred_region
          %s206 = ssub.s32 2048, 2048
          %207 = vsyncadd [#allocation11], %s206
          %s208 = sshll.u32 [#allocation12], 4
          %s209 = int_to_ptr.vmem [resolvable:$true] %s208
          %214 = dma.hbm_to_vmem [thread:$0]  %s4, 2048, %s209, [#allocation11], 128, 128, 8
        $region32: #{tpu_custom_call.1} parent=11 // pred_fallthru
          _
      $region12: #{tpu_custom_call.1} parent=5 // pred_fallthru
        _
      %p215 = scmp.lt.s32.totalorder %s18, 6
      // Predicated region
      $region33: #{tpu_custom_call.1} parent=5 // pred_check
        %p216 = pneg %p215
      $region34: #{tpu_custom_call.1} parent=5 // pred_check_branch
        %218 = sbr.rel (%p216) target = $region36
      $region35: #{tpu_custom_call.1} parent=5 // pred_region
        _
      $region36: #{tpu_custom_call.1} parent=5 // pred_fallthru
        _
      %p219 = scmp.le.s32.totalorder 1, %s18
      %p220 = scmp.lt.s32.totalorder %s18, 7
      %p221 = pnand %p219, %p220
      %p222 = pneg %p221
      // Predicated region
      $region37: #{tpu_custom_call.1} parent=5 // pred_check
        _
      $region38: #{tpu_custom_call.1} parent=5 // pred_check_branch
        %224 = sbr.rel (%p221) target = $region40
      $region39: #{tpu_custom_call.1} parent=5 // pred_region
        %s225 = ssub.s32 %s18, 1
        // Predicated region
        $region41: #{tpu_custom_call.1} parent=39 // pred_check
          %p226 = pneg %p39
        $region42: #{tpu_custom_call.1} parent=39 // pred_check_branch
          %228 = sbr.rel (%p226) target = $region44
        $region43: #{tpu_custom_call.1} parent=39 // pred_region
          %229 = dma.done [#allocation8], 16
        $region44: #{tpu_custom_call.1} parent=39 // pred_fallthru
          _
        // Predicated region
        $region45: #{tpu_custom_call.1} parent=39 // pred_check
          %p230 = pneg %p81
        $region46: #{tpu_custom_call.1} parent=39 // pred_check_branch
          %232 = sbr.rel (%p230) target = $region48
        $region47: #{tpu_custom_call.1} parent=39 // pred_region
          %233 = dma.done [#allocation6], 128
        $region48: #{tpu_custom_call.1} parent=39 // pred_fallthru
          _
        // Predicated region
        $region49: #{tpu_custom_call.1} parent=39 // pred_check
          %p234 = pneg %p102
        $region50: #{tpu_custom_call.1} parent=39 // pred_check_branch
          %236 = sbr.rel (%p234) target = $region52
        $region51: #{tpu_custom_call.1} parent=39 // pred_region
          %237 = dma.done [#allocation11], 2048
        $region52: #{tpu_custom_call.1} parent=39 // pred_fallthru
          _
        // Predicated region
        $region53: #{tpu_custom_call.1} parent=39 // pred_check
          %p238 = pneg %p123
        $region54: #{tpu_custom_call.1} parent=39 // pred_check_branch
          %240 = sbr.rel (%p238) target = $region56
        $region55: #{tpu_custom_call.1} parent=39 // pred_region
          %241 = dma.done [#allocation11], 2048
        $region56: #{tpu_custom_call.1} parent=39 // pred_fallthru
          _
        %242 = sfence
        %p243 = pneg %p39
        %p244 = pneg %p36
        %p245 = pneg %p60
        %p246 = pneg %p57
        %p247 = pneg %p81
        %p248 = pneg %p78
        %p249 = pneg %p102
        %p250 = pneg %p99
        %p251 = pneg %p123
        %p252 = pneg %p120
        %p253 = pneg %p149
        %p254 = pneg %p146
        %s255 = sand.u32 %s136, 1
        %s256 = scalar_lea.sflag [#allocation7], %s255
        %s257 = sand.u32 %s136, 1
        %s258 = smul.addr %s257, 8
        %s259 = scalar_lea.vmem [#allocation13], %s258
        %p260 = scmp.eq.s32.totalorder %s23, 0
        // Predicated region
        $region57: #{tpu_custom_call.1} parent=39 // pred_check
          %p261 = pneg %p260
        $region58: #{tpu_custom_call.1} parent=39 // pred_check_branch
          %263 = sbr.rel (%p261) target = $region60
        $region59: #{tpu_custom_call.1} parent=39 // pred_region
          %264 = vst [vmem:[#allocation2] sm:$0xff] 0.0
          %265 = vst [vmem:[#allocation3] sm:$0xff] 0.0
        $region60: #{tpu_custom_call.1} parent=39 // pred_fallthru
          _
        %s266 = sld [smem:[#allocation5 + %s23]]
        %s267 = sld [smem:[#allocation4]]
        %v268 = vld [vmem:[#allocation2] sm:$0xff]
        %v269 = vld [vmem:[#allocation3] sm:$0xff]
        %s270 = sadd.f32 %s266, 1.0
        %v271 = vstv %s270
        %v272 = vmul.f32 %v271, %v268
        %v273 = vstv %s266
        %v274 = vmul.f32 %v273, %v269
        %v275 = vsub.f32 %v272, %v274
        %v276 = vld [vmem:[#allocation10] sm:$0xff]
        %v277 = vld [vmem:[#allocation10 + $0x8] sm:$0xff]
        %v278 = vld [vmem:[#allocation10 + $0x10] sm:$0xff]
        %v279 = vld [vmem:[#allocation10 + $0x18] sm:$0xff]
        %v280 = vld [vmem:[#allocation10 + $0x20] sm:$0xff]
        %v281 = vld [vmem:[#allocation10 + $0x28] sm:$0xff]
        %v282 = vld [vmem:[#allocation10 + $0x30] sm:$0xff]
        %v283 = vld [vmem:[#allocation10 + $0x38] sm:$0xff]
        %v284 = vld [vmem:[#allocation10 + $0x40] sm:$0xff]
        %v285 = vld [vmem:[#allocation10 + $0x48] sm:$0xff]
        %v286 = vld [vmem:[#allocation10 + $0x50] sm:$0xff]
        %v287 = vld [vmem:[#allocation10 + $0x58] sm:$0xff]
        %v288 = vld [vmem:[#allocation10 + $0x60] sm:$0xff]
        %v289 = vld [vmem:[#allocation10 + $0x68] sm:$0xff]
        %v290 = vld [vmem:[#allocation10 + $0x70] sm:$0xff]
        %v291 = vld [vmem:[#allocation10 + $0x78] sm:$0xff]
        %v292 = vld [vmem:[#allocation9] sm:$0xff]
        %293 = vmatprep.subr.mxu0 0.0
        %294 = vmatpush1.msra.mxu0 %v291
        %295 = vmatprep.subr.mxu0 0.0
        %296 = vmatpush1.msra.mxu0 %v290
        %297 = vmatprep.subr.mxu0 0.0
        %298 = vmatpush1.msra.mxu0 %v289
        %299 = vmatprep.subr.mxu0 0.0
        %300 = vmatpush1.msra.mxu0 %v288
        %301 = vmatprep.subr.mxu0 0.0
        %302 = vmatpush1.msra.mxu0 %v287
        %303 = vmatprep.subr.mxu0 0.0
        %304 = vmatpush1.msra.mxu0 %v286
        %305 = vmatprep.subr.mxu0 0.0
        %306 = vmatpush1.msra.mxu0 %v285
        %307 = vmatprep.subr.mxu0 0.0
        %308 = vmatpush1.msra.mxu0 %v284
        %309 = vmatprep.subr.mxu0 0.0
        %310 = vmatpush1.msra.mxu0 %v283
        %311 = vmatprep.subr.mxu0 0.0
        %312 = vmatpush1.msra.mxu0 %v282
        %313 = vmatprep.subr.mxu0 0.0
        %314 = vmatpush1.msra.mxu0 %v281
        %315 = vmatprep.subr.mxu0 0.0
        %316 = vmatpush1.msra.mxu0 %v280
        %317 = vmatprep.subr.mxu0 0.0
        %318 = vmatpush1.msra.mxu0 %v279
        %319 = vmatprep.subr.mxu0 0.0
        %320 = vmatpush1.msra.mxu0 %v278
        %321 = vmatprep.subr.mxu0 0.0
        %322 = vmatpush1.msra.mxu0 %v277
        %323 = vmatprep.subr.mxu0 0.0
        %324 = vmatpush1.msra.mxu0 %v276
        %325 = vmatprep.subr.mxu0 0.0
        %326 = vmatpush2.msra.mxu0 0.0
        %327 = vmatprep.subr.mxu0 0.0
        %328 = vmatpush2.msra.mxu0 0.0
        %329 = vmatprep.subr.mxu0 0.0
        %330 = vmatpush2.msra.mxu0 0.0
        %331 = vmatprep.subr.mxu0 0.0
        %332 = vmatpush2.msra.mxu0 0.0
        %333 = vmatprep.subr.mxu0 0.0
        %334 = vmatpush2.msra.mxu0 0.0
        %335 = vmatprep.subr.mxu0 0.0
        %336 = vmatpush2.msra.mxu0 0.0
        %337 = vmatprep.subr.mxu0 0.0
        %338 = vmatpush2.msra.mxu0 0.0
        %339 = vmatprep.subr.mxu0 0.0
        %340 = vmatpush2.msra.mxu0 0.0
        %341 = vmatprep.subr.mxu0 0.0
        %342 = vmatpush2.msra.mxu0 0.0
        %343 = vmatprep.subr.mxu0 0.0
        %344 = vmatpush2.msra.mxu0 0.0
        %345 = vmatprep.subr.mxu0 0.0
        %346 = vmatpush2.msra.mxu0 0.0
        %347 = vmatprep.subr.mxu0 0.0
        %348 = vmatpush2.msra.mxu0 0.0
        %349 = vmatprep.subr.mxu0 0.0
        %350 = vmatpush2.msra.mxu0 0.0
        %351 = vmatprep.subr.mxu0 0.0
        %352 = vmatpush2.msra.mxu0 0.0
        %353 = vmatprep.subr.mxu0 0.0
        %354 = vmatpush2.msra.mxu0 0.0
        %355 = vmatprep.subr.mxu0 0.0
        %356 = vmatpush2.msra.mxu0 0.0
        %357 = vmatprep.mubr.f32.mxu0 0.0
        %358 = vmatmul.mubr.f32.gmra.mxu0 %v275
        %v359 = vpop.f32.mrf.mxu0
        %v360 = vadd.f32 %v292, %v359
        %v361 = vpop.f32.mrf.mxu0
        %362 = vdwg.mxu0
        %v363 = vstv %s267
        %v364 = vsub.f32 %v360, %v363
        %v365 = vmax.f32 %v364, 0.0
        %v366 = vsub.f32 0.0, %v360
        %v367 = vsub.f32 %v366, %v363
        %v368 = vmax.f32 %v367, 0.0
        %v369 = vsub.f32 %v365, %v368
        %v370 = vld [vmem:[#allocation12] sm:$0xff]
        %v371 = vld [vmem:[#allocation12 + $0x8] sm:$0xff]
        %v372 = vld [vmem:[#allocation12 + $0x10] sm:$0xff]
        %v373 = vld [vmem:[#allocation12 + $0x18] sm:$0xff]
        %v374 = vld [vmem:[#allocation12 + $0x20] sm:$0xff]
        %v375 = vld [vmem:[#allocation12 + $0x28] sm:$0xff]
        %v376 = vld [vmem:[#allocation12 + $0x30] sm:$0xff]
        %v377 = vld [vmem:[#allocation12 + $0x38] sm:$0xff]
        %v378 = vld [vmem:[#allocation12 + $0x40] sm:$0xff]
        %v379 = vld [vmem:[#allocation12 + $0x48] sm:$0xff]
        %v380 = vld [vmem:[#allocation12 + $0x50] sm:$0xff]
        %v381 = vld [vmem:[#allocation12 + $0x58] sm:$0xff]
        %v382 = vld [vmem:[#allocation12 + $0x60] sm:$0xff]
        %v383 = vld [vmem:[#allocation12 + $0x68] sm:$0xff]
        %v384 = vld [vmem:[#allocation12 + $0x70] sm:$0xff]
        %v385 = vld [vmem:[#allocation12 + $0x78] sm:$0xff]
        %386 = vmatprep.subr.mxu0 0.0
        %387 = vmatpush1.msra.mxu0 %v385
        %388 = vmatprep.subr.mxu0 0.0
        %389 = vmatpush1.msra.mxu0 %v384
        %390 = vmatprep.subr.mxu0 0.0
        %391 = vmatpush1.msra.mxu0 %v383
        %392 = vmatprep.subr.mxu0 0.0
        %393 = vmatpush1.msra.mxu0 %v382
        %394 = vmatprep.subr.mxu0 0.0
        %395 = vmatpush1.msra.mxu0 %v381
        %396 = vmatprep.subr.mxu0 0.0
        %397 = vmatpush1.msra.mxu0 %v380
        %398 = vmatprep.subr.mxu0 0.0
        %399 = vmatpush1.msra.mxu0 %v379
        %400 = vmatprep.subr.mxu0 0.0
        %401 = vmatpush1.msra.mxu0 %v378
        %402 = vmatprep.subr.mxu0 0.0
        %403 = vmatpush1.msra.mxu0 %v377
        %404 = vmatprep.subr.mxu0 0.0
        %405 = vmatpush1.msra.mxu0 %v376
        %406 = vmatprep.subr.mxu0 0.0
        %407 = vmatpush1.msra.mxu0 %v375
        %408 = vmatprep.subr.mxu0 0.0
        %409 = vmatpush1.msra.mxu0 %v374
        %410 = vmatprep.subr.mxu0 0.0
        %411 = vmatpush1.msra.mxu0 %v373
        %412 = vmatprep.subr.mxu0 0.0
        %413 = vmatpush1.msra.mxu0 %v372
        %414 = vmatprep.subr.mxu0 0.0
        %415 = vmatpush1.msra.mxu0 %v371
        %416 = vmatprep.subr.mxu0 0.0
        %417 = vmatpush1.msra.mxu0 %v370
        %418 = vmatprep.subr.mxu0 0.0
        %419 = vmatpush2.msra.mxu0 0.0
        %420 = vmatprep.subr.mxu0 0.0
        %421 = vmatpush2.msra.mxu0 0.0
        %422 = vmatprep.subr.mxu0 0.0
        %423 = vmatpush2.msra.mxu0 0.0
        %424 = vmatprep.subr.mxu0 0.0
        %425 = vmatpush2.msra.mxu0 0.0
        %426 = vmatprep.subr.mxu0 0.0
        %427 = vmatpush2.msra.mxu0 0.0
        %428 = vmatprep.subr.mxu0 0.0
        %429 = vmatpush2.msra.mxu0 0.0
        %430 = vmatprep.subr.mxu0 0.0
        %431 = vmatpush2.msra.mxu0 0.0
        %432 = vmatprep.subr.mxu0 0.0
        %433 = vmatpush2.msra.mxu0 0.0
        %434 = vmatprep.subr.mxu0 0.0
        %435 = vmatpush2.msra.mxu0 0.0
        %436 = vmatprep.subr.mxu0 0.0
        %437 = vmatpush2.msra.mxu0 0.0
        %438 = vmatprep.subr.mxu0 0.0
        %439 = vmatpush2.msra.mxu0 0.0
        %440 = vmatprep.subr.mxu0 0.0
        %441 = vmatpush2.msra.mxu0 0.0
        %442 = vmatprep.subr.mxu0 0.0
        %443 = vmatpush2.msra.mxu0 0.0
        %444 = vmatprep.subr.mxu0 0.0
        %445 = vmatpush2.msra.mxu0 0.0
        %446 = vmatprep.subr.mxu0 0.0
        %447 = vmatpush2.msra.mxu0 0.0
        %448 = vmatprep.subr.mxu0 0.0
        %449 = vmatpush2.msra.mxu0 0.0
        %450 = vmatprep.mubr.f32.mxu0 0.0
        %451 = vmatmul.mubr.f32.gmra.mxu0 %v369
        %v452 = vpop.f32.mrf.mxu0
        %v453 = vadd.f32 0.0, %v452
        %v454 = vpop.f32.mrf.mxu0
        %455 = vdwg.mxu0
        %456 = vst [vmem:[%s259] sm:$0xff] %v453
        %457 = vst [vmem:[#allocation3] sm:$0xff] %v268
        %458 = vst [vmem:[#allocation2] sm:$0xff] %v453
        %s459 = sand.u32 %s136, 1
        %s460 = scalar_lea.sflag [#allocation7], %s459
        %s461 = sand.u32 %s136, 1
        %s462 = smul.addr %s461, 8
        %s463 = scalar_lea.vmem [#allocation13], %s462
        // Predicated region
        $region61: #{tpu_custom_call.1} parent=39 // pred_check
          %p464 = pneg %p146
        $region62: #{tpu_custom_call.1} parent=39 // pred_check_branch
          %466 = sbr.rel (%p464) target = $region64
        $region63: #{tpu_custom_call.1} parent=39 // pred_region
          %s468 = ssub.s32 128, 128
          %469 = vsyncadd %s460, %s468
          %s470 = smul.addr %s23, 128
          %s471 = scalar_lea.hbm %s5, %s470
          %s473 = sshll.u32 %s463, 4
          %s474 = int_to_ptr.vmem [resolvable:$true] %s473
          %476 = dma.vmem_to_hbm [thread:$0]  %s474, 128, %s471, %s460
        $region64: #{tpu_custom_call.1} parent=39 // pred_fallthru
          _
      $region40: #{tpu_custom_call.1} parent=5 // pred_fallthru
        _
      %p477 = scmp.le.s32.totalorder 2, %s18
      // Predicated region
      $region65: #{tpu_custom_call.1} parent=5 // pred_check
        %p478 = pneg %p477
      $region66: #{tpu_custom_call.1} parent=5 // pred_check_branch
        %480 = sbr.rel (%p478) target = $region68
      $region67: #{tpu_custom_call.1} parent=5 // pred_region
        %s481 = ssub.s32 %s18, 2
        // Predicated region
        $region69: #{tpu_custom_call.1} parent=67 // pred_check
          %p482 = pneg %p152
        $region70: #{tpu_custom_call.1} parent=67 // pred_check_branch
          %484 = sbr.rel (%p482) target = $region72
        $region71: #{tpu_custom_call.1} parent=67 // pred_region
          %s485 = sand.u32 %s137, 1
          %s486 = scalar_lea.sflag [#allocation7], %s485
          %s487 = sand.u32 %s137, 1
          %s488 = smul.addr %s487, 8
          %s489 = scalar_lea.vmem [#allocation13], %s488
          %490 = dma.done %s486, 128
        $region72: #{tpu_custom_call.1} parent=67 // pred_fallthru
          _
      $region68: #{tpu_custom_call.1} parent=5 // pred_fallthru
        _
    $region6: #{tpu_custom_call.1} parent=1 // loop_footer
      %s22 = sadd.s32 1, %s18
    $region7: #{tpu_custom_call.1} parent=1 // loop_footer_branch
      %17 = sbr.rel target = $region3
    $region8: #{tpu_custom_call.1} parent=1 // loop_exit
      _
    %491 = vsyncpa [#allocation6], 1
    %s492 = scalar_lea.sflag [#allocation6], 1
    %493 = vsyncpa %s492, 1
    %494 = vsyncpa [#allocation11], 1
    %495 = vsyncpa [#allocation7], 1
    %s496 = scalar_lea.sflag [#allocation7], 1
    %497 = vsyncpa %s496, 1
    %498 = vsyncpa [#allocation8], 1
    %s499 = scalar_lea.sflag [#allocation8], 1
    %500 = vsyncpa %s499, 1

</llo_original>
